<compile_context>
chip_gen: v6e
topology: v6e:2x2x1
jax: 0.10.0
libtpu: 0.0.40
codegen_flags: <defaults>
</compile_context>

<pallas_src>
import functools

import jax
import jax.numpy as jnp
import numpy as np
from jax.experimental import pallas as pl
from jax.experimental.pallas import tpu as pltpu


def _gate_kernel(x_ref, wt_ref, b_ref, o_ref, *, inv_beta, scale):
    # Native-dtype operands on the MXU (bf16 stays bf16); f32 accumulation.
    logits = jnp.dot(x_ref[...], wt_ref[...], preferred_element_type=jnp.float32)
    logits = (logits + b_ref[...].astype(jnp.float32)) * inv_beta
    # Numerically stable softmax over the lane axis, all in f32.
    m = jnp.max(logits, axis=-1, keepdims=True)
    p = jnp.exp(logits - m)
    denom = jnp.sum(p, axis=-1, keepdims=True)
    # Fold the `d_output *` scale into the single per-row normalization.
    o_ref[...] = (p * (scale / denom)).astype(o_ref.dtype)


def _pick_row_tile(n, d_in, d_out_p, x_bytes, out_bytes, w_bytes, block_rows,
                   vmem_budget_bytes):
    """Largest row tile whose double-buffered x/out (+ weight) fit the budget."""
    fixed = d_in * d_out_p * w_bytes + 8 * d_out_p * 4        # weight + bias/slack
    per_row = 2 * (d_in * x_bytes + d_out_p * out_bytes)       # double-buffered x/out
    tm = (vmem_budget_bytes - fixed) // per_row if vmem_budget_bytes > fixed else 8
    tm = int(min(block_rows, tm))
    tm = max(8, (tm // 8) * 8)                                 # sublane multiple
    n8 = ((n + 7) // 8) * 8
    return min(tm, max(8, n8))                                 # don't exceed the data


def _run_gate(x2, wt, b2, *, tm, grid_n, kernel, out_dtype, d_out_p,
              vmem_limit_bytes, cost, single_buffer_params):
    n, d_in = x2.shape
    if single_buffer_params:
        # Grid-invariant weight/bias: DMA'd once; single-buffer to halve VMEM
        # footprint (matters on v7x's 64 MiB VMEM with large gate weights).
        w_spec = pl.BlockSpec((d_in, d_out_p), lambda i: (0, 0),
                              pipeline_mode=pl.Buffered(1))
        b_spec = pl.BlockSpec((1, d_out_p), lambda i: (0, 0),
                              pipeline_mode=pl.Buffered(1))
    else:
        w_spec = pl.BlockSpec((d_in, d_out_p), lambda i: (0, 0))
        b_spec = pl.BlockSpec((1, d_out_p), lambda i: (0, 0))

    return pl.pallas_call(
        kernel,
        out_shape=jax.ShapeDtypeStruct((n, d_out_p), out_dtype),
        grid_spec=pltpu.PrefetchScalarGridSpec(
            num_scalar_prefetch=0,
            grid=(grid_n,),
            in_specs=[
                pl.BlockSpec((tm, d_in), lambda i: (i, 0)),    # activations
                w_spec,                                        # W^T (d_in, d_out)
                b_spec,                                        # bias (1, d_out)
            ],
            out_specs=pl.BlockSpec((tm, d_out_p), lambda i: (i, 0)),
        ),
        compiler_params=pltpu.CompilerParams(
            dimension_semantics=("parallel",),
            vmem_limit_bytes=vmem_limit_bytes),
        cost_estimate=cost,
    )(x2, wt, b2)


def gate_forward(gate_input, weight_t, bias, *, beta=1.0, block_rows=512,
                 out_dtype=None, vmem_limit_bytes=48 * 1024 * 1024):
    """Pallas implementation of Gate.forward.

    gate_input: (..., d_in)
    weight_t:   (d_in, d_out) -- nn.Linear weight pre-transposed ONCE (hoisted
                out of the per-call path; do not pass `weight.T` every step).
    bias:       (d_out,)
    beta:       concrete Python float (matches the module's fixed `self.t`).
    """
    *lead, d_in = gate_input.shape
    d_out = weight_t.shape[1]
    out_dtype = gate_input.dtype if out_dtype is None else out_dtype

    # Lane-dense output width: pad gate columns to a multiple of 128 with
    # -inf bias (exp -> 0) so the real-column softmax is unchanged.
    # TODO(synk): in production, pre-pad the parameters once at init time.
    d_out_p = ((d_out + 127) // 128) * 128
    if d_out_p != d_out:
        wt = jnp.pad(weight_t, ((0, 0), (0, d_out_p - d_out)))
        bias = jnp.concatenate(
            [bias, jnp.full((d_out_p - d_out,), -jnp.inf, bias.dtype)])
    else:
        wt = weight_t
    b2 = bias.reshape(1, d_out_p)

    x2 = gate_input.reshape(-1, d_in)
    n = x2.shape[0]

    tm = _pick_row_tile(
        n, d_in, d_out_p,
        x_bytes=x2.dtype.itemsize,
        out_bytes=jnp.dtype(out_dtype).itemsize,
        w_bytes=wt.dtype.itemsize,
        block_rows=block_rows,
        vmem_budget_bytes=32 * 1024 * 1024)
    grid_n = pl.cdiv(n, tm)   # ragged edge block handled by Pallas masking

    kernel = functools.partial(
        _gate_kernel, inv_beta=float(1.0 / beta), scale=float(d_out))

    cost = pl.CostEstimate(
        flops=2 * n * d_in * d_out_p + 5 * n * d_out_p,
        transcendentals=n * d_out_p,
        bytes_accessed=(x2.size * x2.dtype.itemsize
                        + wt.size * wt.dtype.itemsize
                        + b2.size * b2.dtype.itemsize
                        + n * d_out_p * jnp.dtype(out_dtype).itemsize),
    )

    run = functools.partial(
        _run_gate, x2, wt, b2, tm=tm, grid_n=grid_n, kernel=kernel,
        out_dtype=out_dtype, d_out_p=d_out_p,
        vmem_limit_bytes=vmem_limit_bytes, cost=cost)
    try:
        out = run(single_buffer_params=True)
    except Exception:
        # jax versions without BlockSpec(pipeline_mode=...): fall back to the
        # default double-buffered weight/bias (correctness identical).
        out = run(single_buffer_params=False)

    if d_out_p != d_out:
        out = out[:, :d_out]
    return out.reshape(*lead, d_out)


def gate_ref(gate_input, weight, bias, beta=1.0):
    """Pure-JAX reference mirroring the PyTorch forward (torch weight layout)."""
    d_out = weight.shape[0]
    logits = (gate_input @ weight.T + bias) / beta
    return d_out * jax.nn.softmax(logits, axis=-1)


if __name__ == "__main__":
    # Small shapes: batch=2, seq=8, d_input=32, d_output=128.
    B, T, D_IN, D_OUT = 2, 8, 32, 128
    BETA = 0.7

    key = jax.random.PRNGKey(0)
    kx, kw, kb, kx2 = jax.random.split(key, 4)
    x = jax.random.normal(kx, (B, T, D_IN), jnp.float32)
    w = 0.1 * jax.random.normal(kw, (D_OUT, D_IN), jnp.float32)   # torch layout
    b = 0.1 * jax.random.normal(kb, (D_OUT,), jnp.float32)

    # One-time, hoisted transpose to the kernel's (d_in, d_out) layout.
    wt = jnp.asarray(w.T)

    out = jax.block_until_ready(gate_forward(x, wt, b, beta=BETA))
    ref = jax.block_until_ready(gate_ref(x, w, b, beta=BETA))
    np.testing.assert_allclose(np.asarray(out), np.asarray(ref),
                               rtol=1e-4, atol=1e-4)

    # Ragged row count (n = 15, not a multiple of the row tile): exercises the
    # no-pad / masked-edge-block path.
    x_r = jax.random.normal(kx2, (3, 5, D_IN), jnp.float32)
    out_r = jax.block_until_ready(gate_forward(x_r, wt, b, beta=BETA))
    ref_r = jax.block_until_ready(gate_ref(x_r, w, b, beta=BETA))
    np.testing.assert_allclose(np.asarray(out_r), np.asarray(ref_r),
                               rtol=1e-4, atol=1e-4)

    print("KERNEL_OK")
</pallas_src>

<mosaic_0001>
module attributes {stable_mosaic.version = 11 : i64} {
  func.func @_gate_kernel(%arg0: i32, %arg1: memref<16x32xf32, #tpu.memory_space<vmem>>, %arg2: memref<32x128xf32, #tpu.memory_space<vmem>>, %arg3: memref<1x128xf32, #tpu.memory_space<vmem>>, %arg4: memref<16x128xf32, #tpu.memory_space<vmem>>) attributes {dimension_semantics = [#tpu.dimension_semantics<parallel>], iteration_bounds = array<i64: 1>, scalar_prefetch = 0 : i64, scratch_operands = 0 : i64, tpu.core_type = #tpu.core_type<tc>, window_params = [{transform_indices = @transform_0, window_bounds = array<i64: 16, 32>}, {pipeline_mode = #tpu.pipeline_mode<synchronous>, transform_indices = @transform_1, window_bounds = array<i64: 32, 128>}, {pipeline_mode = #tpu.pipeline_mode<synchronous>, transform_indices = @transform_2, window_bounds = array<i64: 1, 128>}, {transform_indices = @transform_3, window_bounds = array<i64: 16, 128>}]} {
    %c0 = arith.constant 0 : index
    %c0_0 = arith.constant 0 : index
    %0 = vector.load %arg1[%c0, %c0_0] : memref<16x32xf32, #tpu.memory_space<vmem>>, vector<16x32xf32>
    %c0_1 = arith.constant 0 : index
    %c0_2 = arith.constant 0 : index
    %1 = vector.load %arg2[%c0_1, %c0_2] : memref<32x128xf32, #tpu.memory_space<vmem>>, vector<32x128xf32>
    %cst = arith.constant dense<0.000000e+00> : vector<16x128xf32>
    %2 = tpu.matmul %0, %1, %cst {dimension_numbers = #tpu.dot_dimension_numbers<[1], [0], [0], [1], [0, 0, 1, 1], [], []>} : vector<16x32xf32>, vector<32x128xf32>, vector<16x128xf32> -> vector<16x128xf32>
    %c0_3 = arith.constant 0 : index
    %c0_4 = arith.constant 0 : index
    %3 = vector.load %arg3[%c0_3, %c0_4] : memref<1x128xf32, #tpu.memory_space<vmem>>, vector<1x128xf32>
    %4 = vector.broadcast %3 : vector<1x128xf32> to vector<16x128xf32>
    %5 = arith.addf %2, %4 : vector<16x128xf32>
    %cst_5 = arith.constant 1.42857146 : f32
    %6 = vector.broadcast %cst_5 : f32 to vector<16x128xf32>
    %7 = arith.mulf %5, %6 : vector<16x128xf32>
    %cst_6 = arith.constant dense<0xFF800000> : vector<16xf32>
    %8 = vector.multi_reduction <maximumf>, %7, %cst_6 [1] : vector<16x128xf32> to vector<16xf32>
    %9 = vector.shape_cast %8 : vector<16xf32> to vector<16x1xf32>
    %10 = vector.broadcast %9 : vector<16x1xf32> to vector<16x128xf32>
    %11 = arith.subf %7, %10 : vector<16x128xf32>
    %12 = math.exp %11 : vector<16x128xf32>
    %cst_7 = arith.constant dense<0.000000e+00> : vector<16xf32>
    %13 = vector.multi_reduction <add>, %12, %cst_7 [1] : vector<16x128xf32> to vector<16xf32>
    %14 = vector.shape_cast %13 : vector<16xf32> to vector<16x1xf32>
    %cst_8 = arith.constant 1.280000e+02 : f32
    %15 = vector.broadcast %cst_8 : f32 to vector<16x1xf32>
    %16 = arith.divf %15, %14 : vector<16x1xf32>
    %17 = vector.broadcast %16 : vector<16x1xf32> to vector<16x128xf32>
    %18 = arith.mulf %12, %17 : vector<16x128xf32>
    %c0_9 = arith.constant 0 : index
    %c0_10 = arith.constant 0 : index
    %19 = vector.load %arg4[%c0_9, %c0_10] : memref<16x128xf32, #tpu.memory_space<vmem>>, vector<16x128xf32>
    tpu.vector_store %arg4[%c0_9, %c0_10], %18 {strides = array<i32>} : memref<16x128xf32, #tpu.memory_space<vmem>>, vector<16x128xf32>,
    return
  }
  func.func @transform_0(%arg0: i32) -> (i32, i32) {
    %c0_i32 = arith.constant 0 : i32
    %c0_i32_0 = arith.constant 0 : i32
    return %arg0, %c0_i32 : i32, i32
  }
  func.func @transform_1(%arg0: i32) -> (i32, i32) {
    %c0_i32 = arith.constant 0 : i32
    %c0_i32_0 = arith.constant 0 : i32
    %c0_i32_1 = arith.constant 0 : i32
    return %c0_i32, %c0_i32_0 : i32, i32
  }
  func.func @transform_2(%arg0: i32) -> (i32, i32) {
    %c0_i32 = arith.constant 0 : i32
    %c0_i32_0 = arith.constant 0 : i32
    %c0_i32_1 = arith.constant 0 : i32
    return %c0_i32, %c0_i32_0 : i32, i32
  }
  func.func @transform_3(%arg0: i32) -> (i32, i32) {
    %c0_i32 = arith.constant 0 : i32
    %c0_i32_0 = arith.constant 0 : i32
    return %arg0, %c0_i32 : i32, i32
  }
}

module attributes {stable_mosaic.version = 11 : i64} {
  func.func @_gate_kernel(%arg0: i32, %arg1: memref<16x32xf32, #tpu.memory_space<vmem>>, %arg2: memref<32x128xf32, #tpu.memory_space<vmem>>, %arg3: memref<1x128xf32, #tpu.memory_space<vmem>>, %arg4: memref<16x128xf32, #tpu.memory_space<vmem>>) attributes {dimension_semantics = [#tpu.dimension_semantics<parallel>], iteration_bounds = array<i64: 1>, scalar_prefetch = 0 : i64, scratch_operands = 0 : i64, tpu.core_type = #tpu.core_type<tc>, window_params = [{transform_indices = @transform_0, window_bounds = array<i64: 16, 32>}, {pipeline_mode = #tpu.pipeline_mode<synchronous>, transform_indices = @transform_1, window_bounds = array<i64: 32, 128>}, {pipeline_mode = #tpu.pipeline_mode<synchronous>, transform_indices = @transform_2, window_bounds = array<i64: 1, 128>}, {transform_indices = @transform_3, window_bounds = array<i64: 16, 128>}]} {
    %c0 = arith.constant 0 : index
    %c0_0 = arith.constant 0 : index
    %0 = vector.load %arg1[%c0, %c0_0] : memref<16x32xf32, #tpu.memory_space<vmem>>, vector<16x32xf32>
    %c0_1 = arith.constant 0 : index
    %c0_2 = arith.constant 0 : index
    %1 = vector.load %arg2[%c0_1, %c0_2] : memref<32x128xf32, #tpu.memory_space<vmem>>, vector<32x128xf32>
    %cst = arith.constant dense<0.000000e+00> : vector<16x128xf32>
    %2 = tpu.matmul %0, %1, %cst {dimension_numbers = #tpu.dot_dimension_numbers<[1], [0], [0], [1], [0, 0, 1, 1], [], []>} : vector<16x32xf32>, vector<32x128xf32>, vector<16x128xf32> -> vector<16x128xf32>
    %c0_3 = arith.constant 0 : index
    %c0_4 = arith.constant 0 : index
    %3 = vector.load %arg3[%c0_3, %c0_4] : memref<1x128xf32, #tpu.memory_space<vmem>>, vector<1x128xf32>
    %4 = vector.broadcast %3 : vector<1x128xf32> to vector<16x128xf32>
    %5 = arith.addf %2, %4 : vector<16x128xf32>
    %cst_5 = arith.constant 1.42857146 : f32
    %6 = vector.broadcast %cst_5 : f32 to vector<16x128xf32>
    %7 = arith.mulf %5, %6 : vector<16x128xf32>
    %cst_6 = arith.constant dense<0xFF800000> : vector<16xf32>
    %8 = vector.multi_reduction <maximumf>, %7, %cst_6 [1] : vector<16x128xf32> to vector<16xf32>
    %9 = vector.shape_cast %8 : vector<16xf32> to vector<16x1xf32>
    %10 = vector.broadcast %9 : vector<16x1xf32> to vector<16x128xf32>
    %11 = arith.subf %7, %10 : vector<16x128xf32>
    %12 = math.exp %11 : vector<16x128xf32>
    %cst_7 = arith.constant dense<0.000000e+00> : vector<16xf32>
    %13 = vector.multi_reduction <add>, %12, %cst_7 [1] : vector<16x128xf32> to vector<16xf32>
    %14 = vector.shape_cast %13 : vector<16xf32> to vector<16x1xf32>
    %cst_8 = arith.constant 1.280000e+02 : f32
    %15 = vector.broadcast %cst_8 : f32 to vector<16x1xf32>
    %16 = arith.divf %15, %14 : vector<16x1xf32>
    %17 = vector.broadcast %16 : vector<16x1xf32> to vector<16x128xf32>
    %18 = arith.mulf %12, %17 : vector<16x128xf32>
    %c0_9 = arith.constant 0 : index
    %c0_10 = arith.constant 0 : index
    %19 = vector.load %arg4[%c0_9, %c0_10] : memref<16x128xf32, #tpu.memory_space<vmem>>, vector<16x128xf32>
    tpu.vector_store %arg4[%c0_9, %c0_10], %18 {strides = array<i32>} : memref<16x128xf32, #tpu.memory_space<vmem>>, vector<16x128xf32>,
    return
  }
  func.func @transform_0(%arg0: i32) -> (i32, i32) {
    %c0_i32 = arith.constant 0 : i32
    %c0_i32_0 = arith.constant 0 : i32
    return %arg0, %c0_i32 : i32, i32
  }
  func.func @transform_1(%arg0: i32) -> (i32, i32) {
    %c0_i32 = arith.constant 0 : i32
    %c0_i32_0 = arith.constant 0 : i32
    %c0_i32_1 = arith.constant 0 : i32
    return %c0_i32, %c0_i32_0 : i32, i32
  }
  func.func @transform_2(%arg0: i32) -> (i32, i32) {
    %c0_i32 = arith.constant 0 : i32
    %c0_i32_0 = arith.constant 0 : i32
    %c0_i32_1 = arith.constant 0 : i32
    return %c0_i32, %c0_i32_0 : i32, i32
  }
  func.func @transform_3(%arg0: i32) -> (i32, i32) {
    %c0_i32 = arith.constant 0 : i32
    %c0_i32_0 = arith.constant 0 : i32
    return %arg0, %c0_i32 : i32, i32
  }
}

</mosaic_0001>

<llo_original>
// kernel: tpu_custom_call.1
$region0: #{tpu_custom_call.1}
  #allocation0 [shape = 'u32[]', space=smem, size = 0x4, offset = 0x4, fixed_abs, tag = 'smem constant byte address 0x4 - core index']
  #allocation1 [shape = 'u32[144,128]{1,0:T(1,128)}', space=vmem, size = 0x12000, scoped, tag = 'internal scratch']
  %s0 = inlined_call_operand.hbm [shape: f32[16,32], index: 0, kind: input, shape index: {}]
  %s1 = inlined_call_operand.hbm [shape: f32[32,128], index: 1, kind: input, shape index: {}]
  %s2 = inlined_call_operand.vmem [shape: f32[1,128], index: 2, kind: input, shape index: {}]
  %s3 = inlined_call_operand.hbm [shape: f32[16,128], index: 3, kind: output, shape index: {}]
  %s4 = sld [smem:[#allocation0]]
  $region30: #{tpu_custom_call.1} parent=0
    _
  %s6 = ssub.s32 1, %s4
  %s7 = scalar_select 0, %s6, %s4
  $region1: #{tpu_custom_call.1} parent=0
    #allocation2 [shape = 'u8[8192]{0}', space=vmem, size = 0x2000, scoped, tag = 'input window, operand 0, single buffered']
    #allocation3 [shape = 's32[1]{0}', space=sflag, size = 0x4, scoped, tag = 'scoped memory for tpu_custom_call.1']
    #allocation4 [shape = 's32[1]{0}', space=sflag, size = 0x4, scoped, tag = 'scoped memory for tpu_custom_call.1']
    #allocation5 [shape = 'u8[16384]{0}', space=vmem, size = 0x4000, scoped, tag = 'input window, operand 1, single buffered']
    #allocation6 [shape = 's32[1]{0}', space=sflag, size = 0x4, scoped, tag = 'scoped memory for tpu_custom_call.1']
    #allocation7 [shape = 'u8[8192]{0}', space=vmem, size = 0x2000, scoped, tag = 'output window, operand 0, single buffered']
    %8 = vsyncpa [#allocation3], 0
    %9 = vsyncpa [#allocation6], 0
    %10 = vsyncpa [#allocation4], 0
    // Predicated region
    $region2: #{tpu_custom_call.1} parent=1 // pred_check
      _
    $region3: #{tpu_custom_call.1} parent=1 // pred_check_branch
      %12 = sbr.rel (0) target = $region5
    $region4: #{tpu_custom_call.1} parent=1 // pred_region
      %s14 = ssub.s32 256, 256
      %15 = vsyncadd [#allocation3], %s14
      %s16 = sshll.u32 [#allocation2], 4
      %s17 = int_to_ptr.vmem [resolvable:$true] %s16
      %22 = dma.hbm_to_vmem [thread:$0]  %s0, 256, %s17, [#allocation3], 128, 128, 8
    $region5: #{tpu_custom_call.1} parent=1 // pred_fallthru
      _
    // Predicated region
    $region6: #{tpu_custom_call.1} parent=1 // pred_check
      _
    $region7: #{tpu_custom_call.1} parent=1 // pred_check_branch
      %24 = sbr.rel (0) target = $region9
    $region8: #{tpu_custom_call.1} parent=1 // pred_region
      %s26 = ssub.s32 512, 512
      %27 = vsyncadd [#allocation6], %s26
      %s28 = sshll.u32 [#allocation5], 4
      %s29 = int_to_ptr.vmem [resolvable:$true] %s28
      %34 = dma.hbm_to_vmem [thread:$0]  %s1, 512, %s29, [#allocation6], 128, 128, 8
    $region9: #{tpu_custom_call.1} parent=1 // pred_fallthru
      _
    // Predicated region
    $region10: #{tpu_custom_call.1} parent=1 // pred_check
      _
    $region11: #{tpu_custom_call.1} parent=1 // pred_check_branch
      %36 = sbr.rel (0) target = $region13
    $region12: #{tpu_custom_call.1} parent=1 // pred_region
      _
    $region13: #{tpu_custom_call.1} parent=1 // pred_fallthru
      _
    // Predicated region
    $region14: #{tpu_custom_call.1} parent=1 // pred_check
      _
    $region15: #{tpu_custom_call.1} parent=1 // pred_check_branch
      %38 = sbr.rel (0) target = $region17
    $region16: #{tpu_custom_call.1} parent=1 // pred_region
      %39 = dma.done [#allocation3], 256
    $region17: #{tpu_custom_call.1} parent=1 // pred_fallthru
      _
    // Predicated region
    $region18: #{tpu_custom_call.1} parent=1 // pred_check
      _
    $region19: #{tpu_custom_call.1} parent=1 // pred_check_branch
      %41 = sbr.rel (0) target = $region21
    $region20: #{tpu_custom_call.1} parent=1 // pred_region
      %42 = dma.done [#allocation6], 512
    $region21: #{tpu_custom_call.1} parent=1 // pred_fallthru
      _
    %v43 = vld [vmem:[#allocation2] sm:$0xff]
    %v44 = vld [vmem:[#allocation2 + $0x8] sm:$0xff]
    %v45 = vld [vmem:[#allocation5] sm:$0xff]
    %v46 = vld [vmem:[#allocation5 + $0x8] sm:$0xff]
    %v47 = vld [vmem:[#allocation5 + $0x10] sm:$0xff]
    %v48 = vld [vmem:[#allocation5 + $0x18] sm:$0xff]
    %v49 = vld [vmem:[%s2] sm:$0x1]
    %v51 = vlaneseq
    %v52 = vshrl.u32 %v51, 7
    %v53 = vsub.s32 0, %v52
    %v54 = vrot.slane %v49, %v53
    %vm56 = vcmask 261120
    %v58 = vsel %vm56, %v43, 0
    %v61 = vsel %vm56, %v44, 0
    %63 = vmatprep.subr.mxu0 0.0
    %64 = vmatpush1.msra.mxu0 0.0
    %65 = vmatprep.subr.mxu0 0.0
    %66 = vmatpush1.msra.mxu0 0.0
    %67 = vmatprep.subr.mxu0 0.0
    %68 = vmatpush1.msra.mxu0 0.0
    %69 = vmatprep.subr.mxu0 0.0
    %70 = vmatpush1.msra.mxu0 0.0
    %71 = vmatprep.subr.mxu0 0.0
    %72 = vmatpush1.msra.mxu0 0.0
    %73 = vmatprep.subr.mxu0 0.0
    %74 = vmatpush1.msra.mxu0 0.0
    %75 = vmatprep.subr.mxu0 0.0
    %76 = vmatpush1.msra.mxu0 0.0
    %77 = vmatprep.subr.mxu0 0.0
    %78 = vmatpush1.msra.mxu0 0.0
    %79 = vmatprep.subr.mxu0 0.0
    %80 = vmatpush1.msra.mxu0 0.0
    %81 = vmatprep.subr.mxu0 0.0
    %82 = vmatpush1.msra.mxu0 0.0
    %83 = vmatprep.subr.mxu0 0.0
    %84 = vmatpush1.msra.mxu0 0.0
    %85 = vmatprep.subr.mxu0 0.0
    %86 = vmatpush1.msra.mxu0 0.0
    %87 = vmatprep.subr.mxu0 0.0
    %88 = vmatpush1.msra.mxu0 %v48
    %89 = vmatprep.subr.mxu0 0.0
    %90 = vmatpush1.msra.mxu0 %v47
    %91 = vmatprep.subr.mxu0 0.0
    %92 = vmatpush1.msra.mxu0 %v46
    %93 = vmatprep.subr.mxu0 0.0
    %94 = vmatpush1.msra.mxu0 %v45
    %95 = vmatprep.subr.mxu0 0.0
    %96 = vmatpush2.msra.mxu0 0.0
    %97 = vmatprep.subr.mxu0 0.0
    %98 = vmatpush2.msra.mxu0 0.0
    %99 = vmatprep.subr.mxu0 0.0
    %100 = vmatpush2.msra.mxu0 0.0
    %101 = vmatprep.subr.mxu0 0.0
    %102 = vmatpush2.msra.mxu0 0.0
    %103 = vmatprep.subr.mxu0 0.0
    %104 = vmatpush2.msra.mxu0 0.0
    %105 = vmatprep.subr.mxu0 0.0
    %106 = vmatpush2.msra.mxu0 0.0
    %107 = vmatprep.subr.mxu0 0.0
    %108 = vmatpush2.msra.mxu0 0.0
    %109 = vmatprep.subr.mxu0 0.0
    %110 = vmatpush2.msra.mxu0 0.0
    %111 = vmatprep.subr.mxu0 0.0
    %112 = vmatpush2.msra.mxu0 0.0
    %113 = vmatprep.subr.mxu0 0.0
    %114 = vmatpush2.msra.mxu0 0.0
    %115 = vmatprep.subr.mxu0 0.0
    %116 = vmatpush2.msra.mxu0 0.0
    %117 = vmatprep.subr.mxu0 0.0
    %118 = vmatpush2.msra.mxu0 0.0
    %119 = vmatprep.subr.mxu0 0.0
    %120 = vmatpush2.msra.mxu0 0.0
    %121 = vmatprep.subr.mxu0 0.0
    %122 = vmatpush2.msra.mxu0 0.0
    %123 = vmatprep.subr.mxu0 0.0
    %124 = vmatpush2.msra.mxu0 0.0
    %125 = vmatprep.subr.mxu0 0.0
    %126 = vmatpush2.msra.mxu0 0.0
    %127 = vmatprep.mubr.f32.mxu0 0.0
    %128 = vmatmul.mubr.f32.gmra.mxu0 %v58
    %v129 = vpop.f32.mrf.mxu0
    %v130 = vadd.f32 %v54, %v129
    %v131 = vpop.f32.mrf.mxu0
    %132 = vmatprep.mubr.f32.mxu0 0.0
    %133 = vmatmul.mubr.f32.gmra.mxu0 %v61
    %v134 = vpop.f32.mrf.mxu0
    %v135 = vadd.f32 %v54, %v134
    %v136 = vpop.f32.mrf.mxu0
    %137 = vdwg.mxu0
    %v138 = vmul.f32 %v130, 1.4285715
    %v139 = vmul.f32 %v135, 1.4285715
    %140 = vmax.xlane.f32.xlu0 %v138
    %v141 = vpop.xlane.xlu0 %140
    %142 = vmax.xlane.f32.xlu0 %v139
    %v143 = vpop.xlane.xlu0 %142
    %v144 = vsub.f32 %v138, %v141
    %v145 = vsub.f32 %v139, %v143
    %v146 = vmul.f32 %v144, 1.442695
    %v147 = vpow.pop %v146
    %v148 = vmul.f32 %v145, 1.442695
    %v149 = vpow.pop %v148
    %150 = vadd.xlane.f32.xlu0 %v147
    %v151 = vpop.xlane.xlu0 %150
    %152 = vadd.xlane.f32.xlu0 %v149
    %v153 = vpop.xlane.xlu0 %152
    %v154 = vrcp.pop %v151
    %v155 = vmul.f32 128.0, %v154
    %v156 = vrcp.pop %v153
    %v157 = vmul.f32 128.0, %v156
    %v158 = vmul.f32 %v147, %v155
    %v159 = vmul.f32 %v149, %v157
    %160 = vst [vmem:[#allocation7] sm:$0xff] %v158
    %161 = vst [vmem:[#allocation7 + $0x8] sm:$0xff] %v159
    // Predicated region
    $region22: #{tpu_custom_call.1} parent=1 // pred_check
      _
    $region23: #{tpu_custom_call.1} parent=1 // pred_check_branch
      %163 = sbr.rel (0) target = $region25
    $region24: #{tpu_custom_call.1} parent=1 // pred_region
      %s165 = ssub.s32 256, 256
      %166 = vsyncadd [#allocation4], %s165
      %s167 = sshll.u32 [#allocation7], 4
      %s168 = int_to_ptr.vmem [resolvable:$true] %s167
      %173 = dma.vmem_to_hbm [thread:$0]  %s168, 256, %s3, [#allocation4], 128, 128, 8
    $region25: #{tpu_custom_call.1} parent=1 // pred_fallthru
      _
    // Predicated region
    $region26: #{tpu_custom_call.1} parent=1 // pred_check
      _
    $region27: #{tpu_custom_call.1} parent=1 // pred_check_branch
      %175 = sbr.rel (0) target = $region29
    $region28: #{tpu_custom_call.1} parent=1 // pred_region
      %176 = dma.done [#allocation4], 256
    $region29: #{tpu_custom_call.1} parent=1 // pred_fallthru
      _
    %177 = vsyncpa [#allocation3], 1
    %178 = vsyncpa [#allocation6], 1
    %179 = vsyncpa [#allocation4], 1

// kernel: tpu_custom_call.1
$region0: #{tpu_custom_call.1}
  #allocation0 [shape = 'u32[]', space=smem, size = 0x4, offset = 0x4, fixed_abs, tag = 'smem constant byte address 0x4 - core index']
  #allocation1 [shape = 'u32[144,128]{1,0:T(1,128)}', space=vmem, size = 0x12000, scoped, tag = 'internal scratch']
  %s0 = inlined_call_operand.hbm [shape: f32[16,32], index: 0, kind: input, shape index: {}]
  %s1 = inlined_call_operand.hbm [shape: f32[32,128], index: 1, kind: input, shape index: {}]
  %s2 = inlined_call_operand.vmem [shape: f32[1,128], index: 2, kind: input, shape index: {}]
  %s3 = inlined_call_operand.hbm [shape: f32[16,128], index: 3, kind: output, shape index: {}]
  %s4 = sld [smem:[#allocation0]]
  $region30: #{tpu_custom_call.1} parent=0
    _
  %s6 = ssub.s32 1, %s4
  %s7 = scalar_select 0, %s6, %s4
  $region1: #{tpu_custom_call.1} parent=0
    #allocation2 [shape = 'u8[8192]{0}', space=vmem, size = 0x2000, scoped, tag = 'input window, operand 0, single buffered']
    #allocation3 [shape = 's32[1]{0}', space=sflag, size = 0x4, scoped, tag = 'scoped memory for tpu_custom_call.1']
    #allocation4 [shape = 's32[1]{0}', space=sflag, size = 0x4, scoped, tag = 'scoped memory for tpu_custom_call.1']
    #allocation5 [shape = 'u8[16384]{0}', space=vmem, size = 0x4000, scoped, tag = 'input window, operand 1, single buffered']
    #allocation6 [shape = 's32[1]{0}', space=sflag, size = 0x4, scoped, tag = 'scoped memory for tpu_custom_call.1']
    #allocation7 [shape = 'u8[8192]{0}', space=vmem, size = 0x2000, scoped, tag = 'output window, operand 0, single buffered']
    %8 = vsyncpa [#allocation3], 0
    %9 = vsyncpa [#allocation6], 0
    %10 = vsyncpa [#allocation4], 0
    // Predicated region
    $region2: #{tpu_custom_call.1} parent=1 // pred_check
      _
    $region3: #{tpu_custom_call.1} parent=1 // pred_check_branch
      %12 = sbr.rel (0) target = $region5
    $region4: #{tpu_custom_call.1} parent=1 // pred_region
      %s14 = ssub.s32 256, 256
      %15 = vsyncadd [#allocation3], %s14
      %s16 = sshll.u32 [#allocation2], 4
      %s17 = int_to_ptr.vmem [resolvable:$true] %s16
      %22 = dma.hbm_to_vmem [thread:$0]  %s0, 256, %s17, [#allocation3], 128, 128, 8
    $region5: #{tpu_custom_call.1} parent=1 // pred_fallthru
      _
    // Predicated region
    $region6: #{tpu_custom_call.1} parent=1 // pred_check
      _
    $region7: #{tpu_custom_call.1} parent=1 // pred_check_branch
      %24 = sbr.rel (0) target = $region9
    $region8: #{tpu_custom_call.1} parent=1 // pred_region
      %s26 = ssub.s32 512, 512
      %27 = vsyncadd [#allocation6], %s26
      %s28 = sshll.u32 [#allocation5], 4
      %s29 = int_to_ptr.vmem [resolvable:$true] %s28
      %34 = dma.hbm_to_vmem [thread:$0]  %s1, 512, %s29, [#allocation6], 128, 128, 8
    $region9: #{tpu_custom_call.1} parent=1 // pred_fallthru
      _
    // Predicated region
    $region10: #{tpu_custom_call.1} parent=1 // pred_check
      _
    $region11: #{tpu_custom_call.1} parent=1 // pred_check_branch
      %36 = sbr.rel (0) target = $region13
    $region12: #{tpu_custom_call.1} parent=1 // pred_region
      _
    $region13: #{tpu_custom_call.1} parent=1 // pred_fallthru
      _
    // Predicated region
    $region14: #{tpu_custom_call.1} parent=1 // pred_check
      _
    $region15: #{tpu_custom_call.1} parent=1 // pred_check_branch
      %38 = sbr.rel (0) target = $region17
    $region16: #{tpu_custom_call.1} parent=1 // pred_region
      %39 = dma.done [#allocation3], 256
    $region17: #{tpu_custom_call.1} parent=1 // pred_fallthru
      _
    // Predicated region
    $region18: #{tpu_custom_call.1} parent=1 // pred_check
      _
    $region19: #{tpu_custom_call.1} parent=1 // pred_check_branch
      %41 = sbr.rel (0) target = $region21
    $region20: #{tpu_custom_call.1} parent=1 // pred_region
      %42 = dma.done [#allocation6], 512
    $region21: #{tpu_custom_call.1} parent=1 // pred_fallthru
      _
    %v43 = vld [vmem:[#allocation2] sm:$0xff]
    %v44 = vld [vmem:[#allocation2 + $0x8] sm:$0xff]
    %v45 = vld [vmem:[#allocation5] sm:$0xff]
    %v46 = vld [vmem:[#allocation5 + $0x8] sm:$0xff]
    %v47 = vld [vmem:[#allocation5 + $0x10] sm:$0xff]
    %v48 = vld [vmem:[#allocation5 + $0x18] sm:$0xff]
    %v49 = vld [vmem:[%s2] sm:$0x1]
    %v51 = vlaneseq
    %v52 = vshrl.u32 %v51, 7
    %v53 = vsub.s32 0, %v52
    %v54 = vrot.slane %v49, %v53
    %vm56 = vcmask 261120
    %v58 = vsel %vm56, %v43, 0
    %v61 = vsel %vm56, %v44, 0
    %63 = vmatprep.subr.mxu0 0.0
    %64 = vmatpush1.msra.mxu0 0.0
    %65 = vmatprep.subr.mxu0 0.0
    %66 = vmatpush1.msra.mxu0 0.0
    %67 = vmatprep.subr.mxu0 0.0
    %68 = vmatpush1.msra.mxu0 0.0
    %69 = vmatprep.subr.mxu0 0.0
    %70 = vmatpush1.msra.mxu0 0.0
    %71 = vmatprep.subr.mxu0 0.0
    %72 = vmatpush1.msra.mxu0 0.0
    %73 = vmatprep.subr.mxu0 0.0
    %74 = vmatpush1.msra.mxu0 0.0
    %75 = vmatprep.subr.mxu0 0.0
    %76 = vmatpush1.msra.mxu0 0.0
    %77 = vmatprep.subr.mxu0 0.0
    %78 = vmatpush1.msra.mxu0 0.0
    %79 = vmatprep.subr.mxu0 0.0
    %80 = vmatpush1.msra.mxu0 0.0
    %81 = vmatprep.subr.mxu0 0.0
    %82 = vmatpush1.msra.mxu0 0.0
    %83 = vmatprep.subr.mxu0 0.0
    %84 = vmatpush1.msra.mxu0 0.0
    %85 = vmatprep.subr.mxu0 0.0
    %86 = vmatpush1.msra.mxu0 0.0
    %87 = vmatprep.subr.mxu0 0.0
    %88 = vmatpush1.msra.mxu0 %v48
    %89 = vmatprep.subr.mxu0 0.0
    %90 = vmatpush1.msra.mxu0 %v47
    %91 = vmatprep.subr.mxu0 0.0
    %92 = vmatpush1.msra.mxu0 %v46
    %93 = vmatprep.subr.mxu0 0.0
    %94 = vmatpush1.msra.mxu0 %v45
    %95 = vmatprep.subr.mxu0 0.0
    %96 = vmatpush2.msra.mxu0 0.0
    %97 = vmatprep.subr.mxu0 0.0
    %98 = vmatpush2.msra.mxu0 0.0
    %99 = vmatprep.subr.mxu0 0.0
    %100 = vmatpush2.msra.mxu0 0.0
    %101 = vmatprep.subr.mxu0 0.0
    %102 = vmatpush2.msra.mxu0 0.0
    %103 = vmatprep.subr.mxu0 0.0
    %104 = vmatpush2.msra.mxu0 0.0
    %105 = vmatprep.subr.mxu0 0.0
    %106 = vmatpush2.msra.mxu0 0.0
    %107 = vmatprep.subr.mxu0 0.0
    %108 = vmatpush2.msra.mxu0 0.0
    %109 = vmatprep.subr.mxu0 0.0
    %110 = vmatpush2.msra.mxu0 0.0
    %111 = vmatprep.subr.mxu0 0.0
    %112 = vmatpush2.msra.mxu0 0.0
    %113 = vmatprep.subr.mxu0 0.0
    %114 = vmatpush2.msra.mxu0 0.0
    %115 = vmatprep.subr.mxu0 0.0
    %116 = vmatpush2.msra.mxu0 0.0
    %117 = vmatprep.subr.mxu0 0.0
    %118 = vmatpush2.msra.mxu0 0.0
    %119 = vmatprep.subr.mxu0 0.0
    %120 = vmatpush2.msra.mxu0 0.0
    %121 = vmatprep.subr.mxu0 0.0
    %122 = vmatpush2.msra.mxu0 0.0
    %123 = vmatprep.subr.mxu0 0.0
    %124 = vmatpush2.msra.mxu0 0.0
    %125 = vmatprep.subr.mxu0 0.0
    %126 = vmatpush2.msra.mxu0 0.0
    %127 = vmatprep.mubr.f32.mxu0 0.0
    %128 = vmatmul.mubr.f32.gmra.mxu0 %v58
    %v129 = vpop.f32.mrf.mxu0
    %v130 = vadd.f32 %v54, %v129
    %v131 = vpop.f32.mrf.mxu0
    %132 = vmatprep.mubr.f32.mxu0 0.0
    %133 = vmatmul.mubr.f32.gmra.mxu0 %v61
    %v134 = vpop.f32.mrf.mxu0
    %v135 = vadd.f32 %v54, %v134
    %v136 = vpop.f32.mrf.mxu0
    %137 = vdwg.mxu0
    %v138 = vmul.f32 %v130, 1.4285715
    %v139 = vmul.f32 %v135, 1.4285715
    %140 = vmax.xlane.f32.xlu0 %v138
    %v141 = vpop.xlane.xlu0 %140
    %142 = vmax.xlane.f32.xlu0 %v139
    %v143 = vpop.xlane.xlu0 %142
    %v144 = vsub.f32 %v138, %v141
    %v145 = vsub.f32 %v139, %v143
    %v146 = vmul.f32 %v144, 1.442695
    %v147 = vpow.pop %v146
    %v148 = vmul.f32 %v145, 1.442695
    %v149 = vpow.pop %v148
    %150 = vadd.xlane.f32.xlu0 %v147
    %v151 = vpop.xlane.xlu0 %150
    %152 = vadd.xlane.f32.xlu0 %v149
    %v153 = vpop.xlane.xlu0 %152
    %v154 = vrcp.pop %v151
    %v155 = vmul.f32 128.0, %v154
    %v156 = vrcp.pop %v153
    %v157 = vmul.f32 128.0, %v156
    %v158 = vmul.f32 %v147, %v155
    %v159 = vmul.f32 %v149, %v157
    %160 = vst [vmem:[#allocation7] sm:$0xff] %v158
    %161 = vst [vmem:[#allocation7 + $0x8] sm:$0xff] %v159
    // Predicated region
    $region22: #{tpu_custom_call.1} parent=1 // pred_check
      _
    $region23: #{tpu_custom_call.1} parent=1 // pred_check_branch
      %163 = sbr.rel (0) target = $region25
    $region24: #{tpu_custom_call.1} parent=1 // pred_region
      %s165 = ssub.s32 256, 256
      %166 = vsyncadd [#allocation4], %s165
      %s167 = sshll.u32 [#allocation7], 4
      %s168 = int_to_ptr.vmem [resolvable:$true] %s167
      %173 = dma.vmem_to_hbm [thread:$0]  %s168, 256, %s3, [#allocation4], 128, 128, 8
    $region25: #{tpu_custom_call.1} parent=1 // pred_fallthru
      _
    // Predicated region
    $region26: #{tpu_custom_call.1} parent=1 // pred_check
      _
    $region27: #{tpu_custom_call.1} parent=1 // pred_check_branch
      %175 = sbr.rel (0) target = $region29
    $region28: #{tpu_custom_call.1} parent=1 // pred_region
      %176 = dma.done [#allocation4], 256
    $region29: #{tpu_custom_call.1} parent=1 // pred_fallthru
      _
    %177 = vsyncpa [#allocation3], 1
    %178 = vsyncpa [#allocation6], 1
    %179 = vsyncpa [#allocation4], 1

</llo_original>
